<compile_context>
chip_gen: v6e
topology: v6e:2x2x1
jax: 0.10.0
libtpu: 0.0.40
codegen_flags: <defaults>
</compile_context>

<pallas_src>
import jax
import jax.numpy as jnp
from jax.experimental import pallas as pl
from jax.experimental.pallas import tpu as pltpu

# ----------------------- problem sizes (small, deterministic) ----------------
BATCH = 8
N_FINGER_FEATURE = 256   # drug fingerprint feature size
N_SEQ_FEATURE = 128      # protein sequence feature size
N_HIDDEN = 128           # embedding size


# ----------------------------- Pallas kernel ---------------------------------
def _dr_p_embedding_kernel(xd_ref, xp_ref, w_ref, b_ref, o_ref, xcat_ref):
    """Fused forward: both (Linear -> ReLU) branches as ONE MXU dot.

    xd_ref:   [B, K_dr]        f32   drug features
    xp_ref:   [B, K_p]         f32   protein features
    w_ref:    [K_dr+K_p, 2H]   bf16  block-diagonal pre-transposed weights
    b_ref:    [1, 2H]          f32   stacked biases
    o_ref:    [B, 2H]          f32   merged output ( [:, :H]=drug, [:, H:]=protein )
    xcat_ref: [B, K_dr+K_p]    bf16  VMEM scratch holding xd|xp
    """
    k_dr = xd_ref.shape[1]

    # In-kernel concat (two lane-aligned VMEM stores; avoids a wrapper-side
    # XLA concat + HBM round trip). Cast to bf16 here -> bf16-native MXU path.
    xcat_ref[:, :k_dr] = xd_ref[...].astype(xcat_ref.dtype)
    xcat_ref[:, k_dr:] = xp_ref[...].astype(xcat_ref.dtype)

    # Single MXU pass (N = 2H = 256 fills one pass on v6e/v7x), f32 accumulate,
    # fused bias + ReLU epilogue, one lane-dense [B, 256] store.
    acc = jnp.dot(xcat_ref[...], w_ref[...], preferred_element_type=jnp.float32)
    o_ref[...] = jnp.maximum(acc + b_ref[...], 0.0).astype(o_ref.dtype)


@jax.jit
def _dr_p_embedding_pallas(drug_feature, protein_feature, w_block, b_cat):
    """Returns (h_dr, h_p) = relu(Linear(drug)), relu(Linear(protein))."""
    B = drug_feature.shape[0]
    k_total, h2 = w_block.shape          # K_dr + K_p, 2H
    h = h2 // 2

    bytes_accessed = (
        drug_feature.size * drug_feature.dtype.itemsize
        + protein_feature.size * protein_feature.dtype.itemsize
        + w_block.size * w_block.dtype.itemsize
        + b_cat.size * b_cat.dtype.itemsize
        + B * h2 * 4
    )

    out = pl.pallas_call(
        _dr_p_embedding_kernel,
        out_shape=jax.ShapeDtypeStruct((B, h2), jnp.float32),
        # No grid / BlockSpecs: every operand is a single whole-array VMEM
        # block (~220 KiB total) -> no pipeline, minimal fixed cost.
        scratch_shapes=[pltpu.VMEM((B, k_total), jnp.bfloat16)],
        cost_estimate=pl.CostEstimate(
            flops=2 * B * k_total * h2,
            transcendentals=0,
            bytes_accessed=bytes_accessed,
        ),
    )(drug_feature, protein_feature, w_block, b_cat)

    # Split the merged output back into the module's (h_dr, h_p) tuple.
    return out[:, :h], out[:, h:]


# ----------------------------- module wrapper --------------------------------
def init_params(n_finger_feature, n_seq_feature, n_hidden):
    """Deterministic synthetic parameters, packed ONCE for the fused kernel."""
    kd_w, kd_b, kp_w, kp_b = jax.random.split(jax.random.PRNGKey(42), 4)
    # PyTorch nn.Linear weights are (out_features, in_features).
    w_dr = jax.random.normal(kd_w, (n_hidden, n_finger_feature), jnp.float32) * 0.05
    b_dr = jax.random.normal(kd_b, (n_hidden,), jnp.float32) * 0.05
    w_p = jax.random.normal(kp_w, (n_hidden, n_seq_feature), jnp.float32) * 0.05
    b_p = jax.random.normal(kp_b, (n_hidden,), jnp.float32) * 0.05

    # Block-diagonal, pre-transposed, bf16 weight:
    #   [ W_dr^T   0    ]
    #   [   0    W_p^T  ]   shape [K_dr + K_p, 2H]
    k_total = n_finger_feature + n_seq_feature
    w_block = jnp.zeros((k_total, 2 * n_hidden), jnp.float32)
    w_block = w_block.at[:n_finger_feature, :n_hidden].set(w_dr.T)
    w_block = w_block.at[n_finger_feature:, n_hidden:].set(w_p.T)
    w_block = w_block.astype(jnp.bfloat16)

    b_cat = jnp.concatenate([b_dr, b_p])[None, :]       # [1, 2H] f32

    return dict(
        w_block=w_block, b_cat=b_cat,
        # originals kept only for the reference check in __main__
        _w_dr=w_dr, _b_dr=b_dr, _w_p=w_p, _b_p=b_p,
    )


def dr_p_embedding(params, drug_feature, protein_feature):
    """Forward pass of Dr_P_Embedding: (relu(Linear(drug)), relu(Linear(prot)))."""
    return _dr_p_embedding_pallas(
        drug_feature, protein_feature, params["w_block"], params["b_cat"]
    )


# --------------------------------- main ---------------------------------------
if __name__ == "__main__":
    key = jax.random.PRNGKey(0)
    k_drug, k_prot = jax.random.split(key)

    drug_feature = jax.random.normal(k_drug, (BATCH, N_FINGER_FEATURE), jnp.float32)
    protein_feature = jax.random.normal(k_prot, (BATCH, N_SEQ_FEATURE), jnp.float32)

    params = init_params(N_FINGER_FEATURE, N_SEQ_FEATURE, N_HIDDEN)

    h_dr, h_p = dr_p_embedding(params, drug_feature, protein_feature)
    jax.block_until_ready((h_dr, h_p))
    assert h_dr.shape == (BATCH, N_HIDDEN) and h_p.shape == (BATCH, N_HIDDEN)

    # --- reference 1: exactly what the kernel computes (bf16-quantized operands,
    # f32 accumulate) -> tight tolerance.
    xd_q = drug_feature.astype(jnp.bfloat16).astype(jnp.float32)
    xp_q = protein_feature.astype(jnp.bfloat16).astype(jnp.float32)
    w_dr_q = params["w_block"][:N_FINGER_FEATURE, :N_HIDDEN].astype(jnp.float32)
    w_p_q = params["w_block"][N_FINGER_FEATURE:, N_HIDDEN:].astype(jnp.float32)
    ref_dr_q = jnp.maximum(xd_q @ w_dr_q + params["_b_dr"], 0.0)
    ref_p_q = jnp.maximum(xp_q @ w_p_q + params["_b_p"], 0.0)
    assert jnp.allclose(h_dr, ref_dr_q, atol=2e-3, rtol=2e-3)
    assert jnp.allclose(h_p, ref_p_q, atol=2e-3, rtol=2e-3)

    # --- reference 2: original f32 module semantics (loose tolerance because
    # weights/activations are bf16-quantized in the kernel).
    ref_dr = jnp.maximum(drug_feature @ params["_w_dr"].T + params["_b_dr"], 0.0)
    ref_p = jnp.maximum(protein_feature @ params["_w_p"].T + params["_b_p"], 0.0)
    assert jnp.allclose(h_dr, ref_dr, atol=3e-2, rtol=3e-2)
    assert jnp.allclose(h_p, ref_p, atol=3e-2, rtol=3e-2)

    print("KERNEL_OK")
</pallas_src>

<mosaic_0001>
module attributes {stable_mosaic.version = 11 : i64} {
  func.func @_dr_p_embedding_kernel(%arg0: memref<8x256xf32, #tpu.memory_space<vmem>>, %arg1: memref<8x128xf32, #tpu.memory_space<vmem>>, %arg2: memref<384x256xbf16, #tpu.memory_space<vmem>>, %arg3: memref<1x256xf32, #tpu.memory_space<vmem>>, %arg4: memref<8x256xf32, #tpu.memory_space<vmem>>, %arg5: memref<8x384xbf16, #tpu.memory_space<vmem>>) attributes {dimension_semantics = [], scalar_prefetch = 0 : i64, scratch_operands = 1 : i64, tpu.core_type = #tpu.core_type<tc>} {
    %c0 = arith.constant 0 : index
    %c0_0 = arith.constant 0 : index
    %0 = vector.load %arg0[%c0, %c0_0] : memref<8x256xf32, #tpu.memory_space<vmem>>, vector<8x256xf32>
    %1 = arith.truncf %0 : vector<8x256xf32> to vector<8x256xbf16>
    %c0_1 = arith.constant 0 : index
    %c0_2 = arith.constant 0 : index
    %2 = vector.load %arg5[%c0_1, %c0_2] : memref<8x384xbf16, #tpu.memory_space<vmem>>, vector<8x256xbf16>
    tpu.vector_store %arg5[%c0_1, %c0_2], %1 {strides = array<i32>} : memref<8x384xbf16, #tpu.memory_space<vmem>>, vector<8x256xbf16>,
    %c0_3 = arith.constant 0 : index
    %c0_4 = arith.constant 0 : index
    %3 = vector.load %arg1[%c0_3, %c0_4] : memref<8x128xf32, #tpu.memory_space<vmem>>, vector<8x128xf32>
    %4 = arith.truncf %3 : vector<8x128xf32> to vector<8x128xbf16>
    %c0_5 = arith.constant 0 : index
    %c256 = arith.constant 256 : index
    %5 = vector.load %arg5[%c0_5, %c256] : memref<8x384xbf16, #tpu.memory_space<vmem>>, vector<8x128xbf16>
    tpu.vector_store %arg5[%c0_5, %c256], %4 {strides = array<i32>} : memref<8x384xbf16, #tpu.memory_space<vmem>>, vector<8x128xbf16>,
    %c0_6 = arith.constant 0 : index
    %c0_7 = arith.constant 0 : index
    %6 = vector.load %arg5[%c0_6, %c0_7] : memref<8x384xbf16, #tpu.memory_space<vmem>>, vector<8x384xbf16>
    %c0_8 = arith.constant 0 : index
    %c0_9 = arith.constant 0 : index
    %7 = vector.load %arg2[%c0_8, %c0_9] : memref<384x256xbf16, #tpu.memory_space<vmem>>, vector<384x256xbf16>
    %cst = arith.constant dense<0.000000e+00> : vector<8x256xf32>
    %8 = tpu.matmul %6, %7, %cst {dimension_numbers = #tpu.dot_dimension_numbers<[1], [0], [0], [1], [0, 0, 1, 1], [], []>} : vector<8x384xbf16>, vector<384x256xbf16>, vector<8x256xf32> -> vector<8x256xf32>
    %c0_10 = arith.constant 0 : index
    %c0_11 = arith.constant 0 : index
    %9 = vector.load %arg3[%c0_10, %c0_11] : memref<1x256xf32, #tpu.memory_space<vmem>>, vector<1x256xf32>
    %10 = vector.broadcast %9 : vector<1x256xf32> to vector<8x256xf32>
    %11 = arith.addf %8, %10 : vector<8x256xf32>
    %cst_12 = arith.constant 0.000000e+00 : f32
    %12 = vector.broadcast %cst_12 : f32 to vector<8x256xf32>
    %13 = arith.maximumf %11, %12 : vector<8x256xf32>
    %c0_13 = arith.constant 0 : index
    %c0_14 = arith.constant 0 : index
    %14 = vector.load %arg4[%c0_13, %c0_14] : memref<8x256xf32, #tpu.memory_space<vmem>>, vector<8x256xf32>
    tpu.vector_store %arg4[%c0_13, %c0_14], %13 {strides = array<i32>} : memref<8x256xf32, #tpu.memory_space<vmem>>, vector<8x256xf32>,
    return
  }
}

</mosaic_0001>

<llo_original>
// kernel: _dr_p_embedding_pallas.1
$region0: #{_dr_p_embedding_pallas.1}
  #allocation0 [shape = 'u32[]', space=smem, size = 0x4, offset = 0x4, fixed_abs, tag = 'smem constant byte address 0x4 - core index']
  #allocation1 [shape = 'u32[144,128]{1,0:T(1,128)}', space=vmem, size = 0x12000, scoped, tag = 'internal scratch']
  #allocation2 [shape = 'bf16[8,384]{1,0:T(8,128)(2,1)}', space=vmem, size = 0x1800, scoped, tag = 'scratch operand']
  %s0 = inlined_call_operand.hbm [shape: f32[8,256], index: 0, kind: input, shape index: {}]
  %s1 = inlined_call_operand.hbm [shape: f32[8,128], index: 1, kind: input, shape index: {}]
  %s2 = inlined_call_operand.hbm [shape: bf16[384,256], index: 2, kind: input, shape index: {}]
  %s3 = inlined_call_operand.vmem [shape: f32[1,256], index: 3, kind: input, shape index: {}]
  %s4 = inlined_call_operand.vmem [shape: f32[8,256], index: 4, kind: output, shape index: {}]
  %s5 = sld [smem:[#allocation0]]
  $region38: #{_dr_p_embedding_pallas.1} parent=0
    _
  %s7 = ssub.s32 1, %s5
  %s8 = scalar_select 0, %s7, %s5
  $region1: #{_dr_p_embedding_pallas.1} parent=0
    #allocation3 [shape = 'u8[8192]{0}', space=vmem, size = 0x2000, scoped, tag = 'input window, operand 0, single buffered']
    #allocation4 [shape = 's32[1]{0}', space=sflag, size = 0x4, scoped, tag = 'scoped memory for _dr_p_embedding_pallas.1']
    #allocation5 [shape = 'u8[4096]{0}', space=vmem, size = 0x1000, scoped, tag = 'input window, operand 1, single buffered']
    #allocation6 [shape = 's32[1]{0}', space=sflag, size = 0x4, scoped, tag = 'scoped memory for _dr_p_embedding_pallas.1']
    #allocation7 [shape = 'u8[196608]{0}', space=vmem, size = 0x30000, scoped, tag = 'input window, operand 2, single buffered']
    %9 = vsyncpa [#allocation4], 0
    %10 = vsyncpa [#allocation6], 0
    // Predicated region
    $region2: #{_dr_p_embedding_pallas.1} parent=1 // pred_check
      _
    $region3: #{_dr_p_embedding_pallas.1} parent=1 // pred_check_branch
      %12 = sbr.rel (0) target = $region5
    $region4: #{_dr_p_embedding_pallas.1} parent=1 // pred_region
      %s14 = ssub.s32 256, 256
      %15 = vsyncadd [#allocation4], %s14
      %s17 = sshll.u32 [#allocation3], 4
      %s18 = int_to_ptr.vmem [resolvable:$true] %s17
      %20 = dma.hbm_to_vmem [thread:$0]  %s0, 256, %s18, [#allocation4]
    $region5: #{_dr_p_embedding_pallas.1} parent=1 // pred_fallthru
      _
    // Predicated region
    $region6: #{_dr_p_embedding_pallas.1} parent=1 // pred_check
      _
    $region7: #{_dr_p_embedding_pallas.1} parent=1 // pred_check_branch
      %22 = sbr.rel (0) target = $region9
    $region8: #{_dr_p_embedding_pallas.1} parent=1 // pred_region
      %s24 = ssub.s32 128, 128
      %25 = vsyncadd [#allocation6], %s24
      %s27 = sshll.u32 [#allocation5], 4
      %s28 = int_to_ptr.vmem [resolvable:$true] %s27
      %30 = dma.hbm_to_vmem [thread:$0]  %s1, 128, %s28, [#allocation6]
    $region9: #{_dr_p_embedding_pallas.1} parent=1 // pred_fallthru
      _
    // Predicated region
    $region10: #{_dr_p_embedding_pallas.1} parent=1 // pred_check
      _
    $region11: #{_dr_p_embedding_pallas.1} parent=1 // pred_check_branch
      %32 = sbr.rel (0) target = $region13
    $region12: #{_dr_p_embedding_pallas.1} parent=1 // pred_region
      %s34 = ssub.s32 6144, 6144
      %35 = vsyncadd [#allocation6], %s34
      %s36 = sshll.u32 [#allocation7], 4
      %s37 = int_to_ptr.vmem [resolvable:$true] %s36
      %42 = dma.hbm_to_vmem [thread:$0]  %s2, 6144, %s37, [#allocation6], 128, 128, 8
    $region13: #{_dr_p_embedding_pallas.1} parent=1 // pred_fallthru
      _
    // Predicated region
    $region14: #{_dr_p_embedding_pallas.1} parent=1 // pred_check
      _
    $region15: #{_dr_p_embedding_pallas.1} parent=1 // pred_check_branch
      %44 = sbr.rel (0) target = $region17
    $region16: #{_dr_p_embedding_pallas.1} parent=1 // pred_region
      _
    $region17: #{_dr_p_embedding_pallas.1} parent=1 // pred_fallthru
      _
    // Predicated region
    $region18: #{_dr_p_embedding_pallas.1} parent=1 // pred_check
      _
    $region19: #{_dr_p_embedding_pallas.1} parent=1 // pred_check_branch
      %46 = sbr.rel (0) target = $region21
    $region20: #{_dr_p_embedding_pallas.1} parent=1 // pred_region
      %47 = dma.done [#allocation4], 256
    $region21: #{_dr_p_embedding_pallas.1} parent=1 // pred_fallthru
      _
    // Predicated region
    $region22: #{_dr_p_embedding_pallas.1} parent=1 // pred_check
      _
    $region23: #{_dr_p_embedding_pallas.1} parent=1 // pred_check_branch
      %49 = sbr.rel (0) target = $region25
    $region24: #{_dr_p_embedding_pallas.1} parent=1 // pred_region
      %50 = dma.done [#allocation6], 128
    $region25: #{_dr_p_embedding_pallas.1} parent=1 // pred_fallthru
      _
    // Predicated region
    $region26: #{_dr_p_embedding_pallas.1} parent=1 // pred_check
      _
    $region27: #{_dr_p_embedding_pallas.1} parent=1 // pred_check_branch
      %52 = sbr.rel (0) target = $region29
    $region28: #{_dr_p_embedding_pallas.1} parent=1 // pred_region
      %53 = dma.done [#allocation6], 6144
    $region29: #{_dr_p_embedding_pallas.1} parent=1 // pred_fallthru
      _
    %v55 = vld [vmem:[#allocation3] sm:$0xff]
    %v56 = vld [vmem:[#allocation3 + $0x8] sm:$0xff]
    %v57 = vpack.c.bf16 %v55, %v55
    %v58 = vpack.c.bf16 %v56, %v56
    %v61 = vunpack.c.l.b16 %v57
    %v62 = vunpack.c.l.b16 %v58
    %v63 = vpack.c.b16 %v62, %v61
    %65 = vst [vmem:[#allocation2] sm:$0xff] %v63
    %v66 = vld [vmem:[#allocation5] sm:$0xff]
    %v67 = vpack.c.bf16 %v66, %v66
    %68 = vst [vmem:[#allocation2 + $0x8] sm:$0xf] %v67
    %v69 = vld [vmem:[#allocation2] sm:$0xff]
    %v70 = vld [vmem:[#allocation2 + $0x8] sm:$0xf]
    %v71 = vld [vmem:[#allocation7] sm:$0xff]
    %v72 = vld [vmem:[#allocation7 + $0x8] sm:$0xff]
    %v73 = vld [vmem:[#allocation7 + $0x10] sm:$0xff]
    %v74 = vld [vmem:[#allocation7 + $0x18] sm:$0xff]
    %v75 = vld [vmem:[#allocation7 + $0x20] sm:$0xff]
    %v76 = vld [vmem:[#allocation7 + $0x28] sm:$0xff]
    %v77 = vld [vmem:[#allocation7 + $0x30] sm:$0xff]
    %v78 = vld [vmem:[#allocation7 + $0x38] sm:$0xff]
    %v79 = vld [vmem:[#allocation7 + $0x40] sm:$0xff]
    %v80 = vld [vmem:[#allocation7 + $0x48] sm:$0xff]
    %v81 = vld [vmem:[#allocation7 + $0x50] sm:$0xff]
    %v82 = vld [vmem:[#allocation7 + $0x58] sm:$0xff]
    %v83 = vld [vmem:[#allocation7 + $0x60] sm:$0xff]
    %v84 = vld [vmem:[#allocation7 + $0x68] sm:$0xff]
    %v85 = vld [vmem:[#allocation7 + $0x70] sm:$0xff]
    %v86 = vld [vmem:[#allocation7 + $0x78] sm:$0xff]
    %v87 = vld [vmem:[#allocation7 + $0x80] sm:$0xff]
    %v88 = vld [vmem:[#allocation7 + $0x88] sm:$0xff]
    %v89 = vld [vmem:[#allocation7 + $0x90] sm:$0xff]
    %v90 = vld [vmem:[#allocation7 + $0x98] sm:$0xff]
    %v91 = vld [vmem:[#allocation7 + $0xa0] sm:$0xff]
    %v92 = vld [vmem:[#allocation7 + $0xa8] sm:$0xff]
    %v93 = vld [vmem:[#allocation7 + $0xb0] sm:$0xff]
    %v94 = vld [vmem:[#allocation7 + $0xb8] sm:$0xff]
    %v95 = vld [vmem:[#allocation7 + $0xc0] sm:$0xff]
    %v96 = vld [vmem:[#allocation7 + $0xc8] sm:$0xff]
    %v97 = vld [vmem:[#allocation7 + $0xd0] sm:$0xff]
    %v98 = vld [vmem:[#allocation7 + $0xd8] sm:$0xff]
    %v99 = vld [vmem:[#allocation7 + $0xe0] sm:$0xff]
    %v100 = vld [vmem:[#allocation7 + $0xe8] sm:$0xff]
    %v101 = vld [vmem:[#allocation7 + $0xf0] sm:$0xff]
    %v102 = vld [vmem:[#allocation7 + $0xf8] sm:$0xff]
    %v103 = vld [vmem:[#allocation7 + $0x100] sm:$0xff]
    %v104 = vld [vmem:[#allocation7 + $0x108] sm:$0xff]
    %v105 = vld [vmem:[#allocation7 + $0x110] sm:$0xff]
    %v106 = vld [vmem:[#allocation7 + $0x118] sm:$0xff]
    %v107 = vld [vmem:[#allocation7 + $0x120] sm:$0xff]
    %v108 = vld [vmem:[#allocation7 + $0x128] sm:$0xff]
    %v109 = vld [vmem:[#allocation7 + $0x130] sm:$0xff]
    %v110 = vld [vmem:[#allocation7 + $0x138] sm:$0xff]
    %v111 = vld [vmem:[#allocation7 + $0x140] sm:$0xff]
    %v112 = vld [vmem:[#allocation7 + $0x148] sm:$0xff]
    %v113 = vld [vmem:[#allocation7 + $0x150] sm:$0xff]
    %v114 = vld [vmem:[#allocation7 + $0x158] sm:$0xff]
    %v115 = vld [vmem:[#allocation7 + $0x160] sm:$0xff]
    %v116 = vld [vmem:[#allocation7 + $0x168] sm:$0xff]
    %v117 = vld [vmem:[#allocation7 + $0x170] sm:$0xff]
    %v118 = vld [vmem:[#allocation7 + $0x178] sm:$0xff]
    %v119 = vld [vmem:[%s3] sm:$0x3]
    %v121 = vlaneseq
    %v122 = vshrl.u32 %v121, 7
    %v123 = vsub.s32 0, %v122
    %v124 = vrot.slane %v119, %v123
    %v125 = vlaneseq
    %v126 = vshrl.u32 %v125, 7
    %v127 = vsub.s32 1, %v126
    %v128 = vrot.slane %v119, %v127
    %v133 = vunpack.c.l.b16 %v69
    %v134 = vunpack.c.h.b16 %v69
    %v135 = vunpack.c.l.b16 %v70
    %v136 = vpack.c.b16 %v133, %v133
    %v137 = vpack.c.b16 %v134, %v134
    %v138 = vpack.c.b16 %v135, %v135
    %v190 = vunpack.c.l.b16 %v71
    %v191 = vunpack.c.h.b16 %v71
    %v192 = vunpack.c.l.b16 %v72
    %v193 = vunpack.c.h.b16 %v72
    %v194 = vunpack.c.l.b16 %v73
    %v195 = vunpack.c.h.b16 %v73
    %v196 = vunpack.c.l.b16 %v74
    %v197 = vunpack.c.h.b16 %v74
    %v198 = vunpack.c.l.b16 %v75
    %v199 = vunpack.c.h.b16 %v75
    %v200 = vunpack.c.l.b16 %v76
    %v201 = vunpack.c.h.b16 %v76
    %v202 = vunpack.c.l.b16 %v77
    %v203 = vunpack.c.h.b16 %v77
    %v204 = vunpack.c.l.b16 %v78
    %v205 = vunpack.c.h.b16 %v78
    %v206 = vunpack.c.l.b16 %v79
    %v207 = vunpack.c.h.b16 %v79
    %v208 = vunpack.c.l.b16 %v80
    %v209 = vunpack.c.h.b16 %v80
    %v210 = vunpack.c.l.b16 %v81
    %v211 = vunpack.c.h.b16 %v81
    %v212 = vunpack.c.l.b16 %v82
    %v213 = vunpack.c.h.b16 %v82
    %v214 = vunpack.c.l.b16 %v83
    %v215 = vunpack.c.h.b16 %v83
    %v216 = vunpack.c.l.b16 %v84
    %v217 = vunpack.c.h.b16 %v84
    %v218 = vunpack.c.l.b16 %v85
    %v219 = vunpack.c.h.b16 %v85
    %v220 = vunpack.c.l.b16 %v86
    %v221 = vunpack.c.h.b16 %v86
    %v222 = vunpack.c.l.b16 %v87
    %v223 = vunpack.c.h.b16 %v87
    %v224 = vunpack.c.l.b16 %v88
    %v225 = vunpack.c.h.b16 %v88
    %v226 = vunpack.c.l.b16 %v89
    %v227 = vunpack.c.h.b16 %v89
    %v228 = vunpack.c.l.b16 %v90
    %v229 = vunpack.c.h.b16 %v90
    %v230 = vunpack.c.l.b16 %v91
    %v231 = vunpack.c.h.b16 %v91
    %v232 = vunpack.c.l.b16 %v92
    %v233 = vunpack.c.h.b16 %v92
    %v234 = vunpack.c.l.b16 %v93
    %v235 = vunpack.c.h.b16 %v93
    %v236 = vunpack.c.l.b16 %v94
    %v237 = vunpack.c.h.b16 %v94
    %v238 = vunpack.c.l.b16 %v95
    %v239 = vunpack.c.h.b16 %v95
    %v240 = vunpack.c.l.b16 %v96
    %v241 = vunpack.c.h.b16 %v96
    %v242 = vunpack.c.l.b16 %v97
    %v243 = vunpack.c.h.b16 %v97
    %v244 = vunpack.c.l.b16 %v98
    %v245 = vunpack.c.h.b16 %v98
    %v246 = vunpack.c.l.b16 %v99
    %v247 = vunpack.c.h.b16 %v99
    %v248 = vunpack.c.l.b16 %v100
    %v249 = vunpack.c.h.b16 %v100
    %v250 = vunpack.c.l.b16 %v101
    %v251 = vunpack.c.h.b16 %v101
    %v252 = vunpack.c.l.b16 %v102
    %v253 = vunpack.c.h.b16 %v102
    %v254 = vunpack.c.l.b16 %v103
    %v255 = vunpack.c.h.b16 %v103
    %v256 = vunpack.c.l.b16 %v104
    %v257 = vunpack.c.h.b16 %v104
    %v258 = vunpack.c.l.b16 %v105
    %v259 = vunpack.c.h.b16 %v105
    %v260 = vunpack.c.l.b16 %v106
    %v261 = vunpack.c.h.b16 %v106
    %v262 = vunpack.c.l.b16 %v107
    %v263 = vunpack.c.h.b16 %v107
    %v264 = vunpack.c.l.b16 %v108
    %v265 = vunpack.c.h.b16 %v108
    %v266 = vunpack.c.l.b16 %v109
    %v267 = vunpack.c.h.b16 %v109
    %v268 = vunpack.c.l.b16 %v110
    %v269 = vunpack.c.h.b16 %v110
    %v270 = vunpack.c.l.b16 %v111
    %v271 = vunpack.c.h.b16 %v111
    %v272 = vunpack.c.l.b16 %v112
    %v273 = vunpack.c.h.b16 %v112
    %v274 = vunpack.c.l.b16 %v113
    %v275 = vunpack.c.h.b16 %v113
    %v276 = vunpack.c.l.b16 %v114
    %v277 = vunpack.c.h.b16 %v114
    %v278 = vunpack.c.l.b16 %v115
    %v279 = vunpack.c.h.b16 %v115
    %v280 = vunpack.c.l.b16 %v116
    %v281 = vunpack.c.h.b16 %v116
    %v282 = vunpack.c.l.b16 %v117
    %v283 = vunpack.c.h.b16 %v117
    %v284 = vunpack.c.l.b16 %v118
    %v285 = vunpack.c.h.b16 %v118
    %v286 = vpack.c.b16 %v192, %v190
    %v287 = vpack.c.b16 %v193, %v191
    %v288 = vpack.c.b16 %v196, %v194
    %v289 = vpack.c.b16 %v197, %v195
    %v290 = vpack.c.b16 %v200, %v198
    %v291 = vpack.c.b16 %v201, %v199
    %v292 = vpack.c.b16 %v204, %v202
    %v293 = vpack.c.b16 %v205, %v203
    %v294 = vpack.c.b16 %v208, %v206
    %v295 = vpack.c.b16 %v209, %v207
    %v296 = vpack.c.b16 %v212, %v210
    %v297 = vpack.c.b16 %v213, %v211
    %v298 = vpack.c.b16 %v216, %v214
    %v299 = vpack.c.b16 %v217, %v215
    %v300 = vpack.c.b16 %v220, %v218
    %v301 = vpack.c.b16 %v221, %v219
    %v302 = vpack.c.b16 %v224, %v222
    %v303 = vpack.c.b16 %v225, %v223
    %v304 = vpack.c.b16 %v228, %v226
    %v305 = vpack.c.b16 %v229, %v227
    %v306 = vpack.c.b16 %v232, %v230
    %v307 = vpack.c.b16 %v233, %v231
    %v308 = vpack.c.b16 %v236, %v234
    %v309 = vpack.c.b16 %v237, %v235
    %v310 = vpack.c.b16 %v240, %v238
    %v311 = vpack.c.b16 %v241, %v239
    %v312 = vpack.c.b16 %v244, %v242
    %v313 = vpack.c.b16 %v245, %v243
    %v314 = vpack.c.b16 %v248, %v246
    %v315 = vpack.c.b16 %v249, %v247
    %v316 = vpack.c.b16 %v252, %v250
    %v317 = vpack.c.b16 %v253, %v251
    %v318 = vpack.c.b16 %v256, %v254
    %v319 = vpack.c.b16 %v257, %v255
    %v320 = vpack.c.b16 %v260, %v258
    %v321 = vpack.c.b16 %v261, %v259
    %v322 = vpack.c.b16 %v264, %v262
    %v323 = vpack.c.b16 %v265, %v263
    %v324 = vpack.c.b16 %v268, %v266
    %v325 = vpack.c.b16 %v269, %v267
    %v326 = vpack.c.b16 %v272, %v270
    %v327 = vpack.c.b16 %v273, %v271
    %v328 = vpack.c.b16 %v276, %v274
    %v329 = vpack.c.b16 %v277, %v275
    %v330 = vpack.c.b16 %v280, %v278
    %v331 = vpack.c.b16 %v281, %v279
    %v332 = vpack.c.b16 %v284, %v282
    %v333 = vpack.c.b16 %v285, %v283
    %382 = vmatprep.subr.bf16.mxu0 %v301
    %383 = vmatpush1.bf16.msra.mxu0 %v300
    %384 = vmatprep.subr.bf16.mxu0 %v299
    %385 = vmatpush1.bf16.msra.mxu0 %v298
    %386 = vmatprep.subr.bf16.mxu0 %v297
    %387 = vmatpush1.bf16.msra.mxu0 %v296
    %388 = vmatprep.subr.bf16.mxu0 %v295
    %389 = vmatpush1.bf16.msra.mxu0 %v294
    %390 = vmatprep.subr.bf16.mxu0 %v293
    %391 = vmatpush1.bf16.msra.mxu0 %v292
    %392 = vmatprep.subr.bf16.mxu0 %v291
    %393 = vmatpush1.bf16.msra.mxu0 %v290
    %394 = vmatprep.subr.bf16.mxu0 %v289
    %395 = vmatpush1.bf16.msra.mxu0 %v288
    %396 = vmatprep.subr.bf16.mxu0 %v287
    %397 = vmatpush1.bf16.msra.mxu0 %v286
    %398 = vmatprep.subr.bf16.mxu0 %v317
    %399 = vmatpush2.bf16.msra.mxu0 %v316
    %400 = vmatprep.subr.bf16.mxu0 %v315
    %401 = vmatpush2.bf16.msra.mxu0 %v314
    %402 = vmatprep.subr.bf16.mxu0 %v313
    %403 = vmatpush2.bf16.msra.mxu0 %v312
    %404 = vmatprep.subr.bf16.mxu0 %v311
    %405 = vmatpush2.bf16.msra.mxu0 %v310
    %406 = vmatprep.subr.bf16.mxu0 %v309
    %407 = vmatpush2.bf16.msra.mxu0 %v308
    %408 = vmatprep.subr.bf16.mxu0 %v307
    %409 = vmatpush2.bf16.msra.mxu0 %v306
    %410 = vmatprep.subr.bf16.mxu0 %v305
    %411 = vmatpush2.bf16.msra.mxu0 %v304
    %412 = vmatprep.subr.bf16.mxu0 %v303
    %413 = vmatpush2.bf16.msra.mxu0 %v302
    %414 = vmatprep.mubr.bf16.mxu0 %v137
    %415 = vmatmul.mubr.bf16.gmra.mxu0 %v136
    %v416 = vpop.f32.mrf.mxu0
    %v417 = vadd.f32 %v124, %v416
    %v418 = vpop.f32.mrf.mxu0
    %v419 = vadd.f32 %v128, %v418
    %v420 = vpop.f32.mrf.mxu0
    %v421 = vpop.f32.mrf.mxu0
    %422 = vdwg.mxu0
    %423 = vmatprep.subr.bf16.mxu0 %v333
    %424 = vmatpush1.bf16.msra.mxu0 %v332
    %425 = vmatprep.subr.bf16.mxu0 %v331
    %426 = vmatpush1.bf16.msra.mxu0 %v330
    %427 = vmatprep.subr.bf16.mxu0 %v329
    %428 = vmatpush1.bf16.msra.mxu0 %v328
    %429 = vmatprep.subr.bf16.mxu0 %v327
    %430 = vmatpush1.bf16.msra.mxu0 %v326
    %431 = vmatprep.subr.bf16.mxu0 %v325
    %432 = vmatpush1.bf16.msra.mxu0 %v324
    %433 = vmatprep.subr.bf16.mxu0 %v323
    %434 = vmatpush1.bf16.msra.mxu0 %v322
    %435 = vmatprep.subr.bf16.mxu0 %v321
    %436 = vmatpush1.bf16.msra.mxu0 %v320
    %437 = vmatprep.subr.bf16.mxu0 %v319
    %438 = vmatpush1.bf16.msra.mxu0 %v318
    %439 = vmatprep.subr.bf16.mxu0 0
    %440 = vmatpush2.bf16.msra.mxu0 0
    %441 = vmatprep.subr.bf16.mxu0 0
    %442 = vmatpush2.bf16.msra.mxu0 0
    %443 = vmatprep.subr.bf16.mxu0 0
    %444 = vmatpush2.bf16.msra.mxu0 0
    %445 = vmatprep.subr.bf16.mxu0 0
    %446 = vmatpush2.bf16.msra.mxu0 0
    %447 = vmatprep.subr.bf16.mxu0 0
    %448 = vmatpush2.bf16.msra.mxu0 0
    %449 = vmatprep.subr.bf16.mxu0 0
    %450 = vmatpush2.bf16.msra.mxu0 0
    %451 = vmatprep.subr.bf16.mxu0 0
    %452 = vmatpush2.bf16.msra.mxu0 0
    %453 = vmatprep.subr.bf16.mxu0 0
    %454 = vmatpush2.bf16.msra.mxu0 0
    %455 = vmatprep.mubr.bf16.mxu0 0
    %456 = vmatmul.mubr.bf16.gmra.mxu0 %v138
    %v457 = vpop.f32.mrf.mxu0
    %v458 = vadd.f32 %v417, %v457
    %v459 = vpop.f32.mrf.mxu0
    %v460 = vadd.f32 %v419, %v459
    %v461 = vpop.f32.mrf.mxu0
    %v462 = vpop.f32.mrf.mxu0
    %463 = vdwg.mxu0
    %v464 = vmax.f32 %v458, 0.0
    %v465 = vmax.f32 %v460, 0.0
    %466 = vst [vmem:[%s4] sm:$0xff] %v464
    %467 = vst [vmem:[%s4 + $0x8] sm:$0xff] %v465
    // Predicated region
    $region30: #{_dr_p_embedding_pallas.1} parent=1 // pred_check
      _
    $region31: #{_dr_p_embedding_pallas.1} parent=1 // pred_check_branch
      %469 = sbr.rel (0) target = $region33
    $region32: #{_dr_p_embedding_pallas.1} parent=1 // pred_region
      _
    $region33: #{_dr_p_embedding_pallas.1} parent=1 // pred_fallthru
      _
    // Predicated region
    $region34: #{_dr_p_embedding_pallas.1} parent=1 // pred_check
      _
    $region35: #{_dr_p_embedding_pallas.1} parent=1 // pred_check_branch
      %471 = sbr.rel (0) target = $region37
    $region36: #{_dr_p_embedding_pallas.1} parent=1 // pred_region
      _
    $region37: #{_dr_p_embedding_pallas.1} parent=1 // pred_fallthru
      _
    %472 = vsyncpa [#allocation4], 1
    %473 = vsyncpa [#allocation6], 1

</llo_original>
